<compile_context>
chip_gen: v7x
topology: tpu7x:2x2x1
jax: 0.10.0
libtpu: 0.0.40
codegen_flags: <defaults>
</compile_context>

<pallas_src>
import math

import jax
import jax.numpy as jnp
from jax.experimental import pallas as pl
from jax.experimental.pallas import tpu as pltpu


def _round_up(x, m):
    return (x + m - 1) // m * m


def _choose_row_tile(rows, requested, max_tile):
    """Pick a row tile: big (amortize per-step overhead) but >= 2 grid steps
    when possible (keeps both v7x TensorCores busy)."""
    if requested is not None:
        rt = requested
    else:
        rt = min(max_tile, _round_up(rows, 8))
        if rows > 16 and _round_up(rows, 8) // rt < 2:
            rt = _round_up(pl.cdiv(rows, 2), 8)
    return max(8, _round_up(rt, 8))


def _softplus(x):
    # Overflow-safe softplus: max(x, 0) + log1p(exp(-|x|)).
    # Equals torch.nn.Softplus(beta=1, threshold=20) to float32 precision
    # (for x > 20, log1p(exp(-x)) < 3e-9 which vanishes under f32 rounding).
    return jnp.maximum(x, 0.0) + jnp.log1p(jnp.exp(-jnp.abs(x)))


def _tex_decoder_kernel(x_ref, w1_ref, b1_ref, w2_ref, b2_ref, w3_ref, b3_ref,
                        o_ref):
    h = x_ref[...].astype(jnp.float32)

    # FC1 + Softplus  (gain already folded into w1)
    h = _softplus(
        jnp.dot(h, w1_ref[...], preferred_element_type=jnp.float32) + b1_ref[...])
    # FC2 + Softplus
    h = _softplus(
        jnp.dot(h, w2_ref[...], preferred_element_type=jnp.float32) + b2_ref[...])
    # FC3 + Softplus
    h = _softplus(
        jnp.dot(h, w3_ref[...], preferred_element_type=jnp.float32) + b3_ref[...])

    o_ref[...] = h.astype(o_ref.dtype)


def tex_decoder_forward(sampled_features_tex, params, *, row_tile=None,
                        max_row_tile=1024):
    """Pallas implementation of TexDecoder.forward.

    sampled_features_tex: (N, CC, M, C)
    params: dict with w1,w2,w3 of shape (C, C) ("torch" layout: (out, in))
            and b1,b2,b3 of shape (C,)
    """
    N, CC, M, C = sampled_features_tex.shape
    rows = N * CC * M

    rt = _choose_row_tile(rows, row_tile, max_row_tile)
    rows_padded = _round_up(rows, rt)

    x2d = sampled_features_tex.reshape(rows, C)
    if rows_padded != rows:
        # Ragged last tile: pad with zeros, slice off after the kernel.
        x2d = jnp.pad(x2d, ((0, rows_padded - rows), (0, 0)))

    # Glue: pre-transpose weights to (in, out) and fold in the 1/sqrt(C) gain
    # (lr_multiplier=1) so the kernel is a plain matmul + bias + softplus.
    gain = 1.0 / math.sqrt(C)
    w1t = (params["w1"].astype(jnp.float32) * gain).T
    w2t = (params["w2"].astype(jnp.float32) * gain).T
    w3t = (params["w3"].astype(jnp.float32) * gain).T
    b1 = params["b1"].reshape(1, C).astype(jnp.float32)
    b2 = params["b2"].reshape(1, C).astype(jnp.float32)
    b3 = params["b3"].reshape(1, C).astype(jnp.float32)

    grid = (rows_padded // rt,)

    x_spec = pl.BlockSpec((rt, C), lambda i: (i, 0))
    w_spec = pl.BlockSpec((C, C), lambda i: (0, 0))   # resident (constant idx)
    b_spec = pl.BlockSpec((1, C), lambda i: (0, 0))
    out_spec = pl.BlockSpec((rt, C), lambda i: (i, 0))

    # Only bump the scoped-VMEM limit when an explicitly requested huge tile
    # would exceed the conservative defaults (matters on v5e, 16 MiB default).
    itemsize = jnp.dtype(sampled_features_tex.dtype).itemsize
    est_vmem = (
        2 * rt * C * itemsize * 2                 # x + out, double-buffered
        + 2 * (3 * C * C + 3 * C) * 4             # weights + biases
        + 6 * rt * C * 4                          # f32 temporaries in the body
    )
    compiler_kwargs = dict(dimension_semantics=("parallel",))
    if est_vmem > (12 << 20):
        compiler_kwargs["vmem_limit_bytes"] = int(est_vmem * 1.25)

    out2d = pl.pallas_call(
        _tex_decoder_kernel,
        out_shape=jax.ShapeDtypeStruct((rows_padded, C),
                                       sampled_features_tex.dtype),
        grid_spec=pltpu.PrefetchScalarGridSpec(
            num_scalar_prefetch=0,
            grid=grid,
            in_specs=[x_spec, w_spec, b_spec, w_spec, b_spec, w_spec, b_spec],
            out_specs=out_spec,
        ),
        compiler_params=pltpu.CompilerParams(**compiler_kwargs),
    )(x2d, w1t, b1, w2t, b2, w3t, b3)

    if rows_padded != rows:
        out2d = out2d[:rows]
    return out2d.reshape(N, CC, M, C)
    # TODO(synk): optionally accept bf16 activations (cast x / out in the
    # wrapper) to halve HBM traffic on v5e/v6e when callers tolerate it.


def init_params(key, n_features):
    """Deterministic init matching FullyConnectedLayer(__init__):
    weight ~ randn(out, in) / lr_multiplier (=1), bias = bias_init (=0)."""
    k1, k2, k3 = jax.random.split(key, 3)
    C = n_features
    return {
        "w1": jax.random.normal(k1, (C, C), jnp.float32),
        "b1": jnp.zeros((C,), jnp.float32),
        "w2": jax.random.normal(k2, (C, C), jnp.float32),
        "b2": jnp.zeros((C,), jnp.float32),
        "w3": jax.random.normal(k3, (C, C), jnp.float32),
        "b3": jnp.zeros((C,), jnp.float32),
    }


def _softplus_torch(x):
    # Literal torch.nn.Softplus(beta=1, threshold=20) for the reference.
    return jnp.where(x > 20.0, x, jnp.log1p(jnp.exp(jnp.minimum(x, 20.0))))


def _reference_forward(x, params):
    """Plain-JAX reference mirroring the torch module exactly."""
    N, CC, M, C = x.shape
    gain = 1.0 / math.sqrt(C)
    h = x.reshape(N * CC * M, C)
    for wi, bi in (("w1", "b1"), ("w2", "b2"), ("w3", "b3")):
        h = h @ (params[wi] * gain).T + params[bi]
        h = _softplus_torch(h)
    return h.reshape(N, CC, M, C)


if __name__ == "__main__":
    key = jax.random.PRNGKey(0)
    k_x, k_p, k_x2 = jax.random.split(key, 3)

    # Small shapes consistent with the module: triplane features sampled at M
    # points, CC=3 planes, batch N=2, n_features=128.
    N, CC, M, C = 2, 3, 16, 128
    x = jax.random.normal(k_x, (N, CC, M, C), jnp.float32)
    params = init_params(k_p, C)

    out = tex_decoder_forward(x, params)
    out = jax.block_until_ready(out)
    ref = _reference_forward(x, params)
    assert out.shape == (N, CC, M, C)
    assert jnp.allclose(out, ref, atol=1e-4, rtol=1e-4)

    # Ragged row count (rows not a multiple of the tile) exercises the
    # pad-and-slice path.
    M2 = 15
    x2 = jax.random.normal(k_x2, (N, CC, M2, C), jnp.float32)
    out2 = jax.block_until_ready(tex_decoder_forward(x2, params))
    ref2 = _reference_forward(x2, params)
    assert out2.shape == (N, CC, M2, C)
    assert jnp.allclose(out2, ref2, atol=1e-4, rtol=1e-4)

    print("KERNEL_OK")
</pallas_src>

<mosaic_0001>
module attributes {stable_mosaic.version = 11 : i64} {
  func.func @_tex_decoder_kernel(%arg0: i32, %arg1: memref<48x128xf32, #tpu.memory_space<vmem>>, %arg2: memref<128x128xf32, #tpu.memory_space<vmem>>, %arg3: memref<1x128xf32, #tpu.memory_space<vmem>>, %arg4: memref<128x128xf32, #tpu.memory_space<vmem>>, %arg5: memref<1x128xf32, #tpu.memory_space<vmem>>, %arg6: memref<128x128xf32, #tpu.memory_space<vmem>>, %arg7: memref<1x128xf32, #tpu.memory_space<vmem>>, %arg8: memref<48x128xf32, #tpu.memory_space<vmem>>) attributes {dimension_semantics = [#tpu.dimension_semantics<parallel>], iteration_bounds = array<i64: 2>, scalar_prefetch = 0 : i64, scratch_operands = 0 : i64, tpu.core_type = #tpu.core_type<tc>, window_params = [{transform_indices = @transform_0, window_bounds = array<i64: 48, 128>}, {pipeline_mode = #tpu.pipeline_mode<synchronous>, transform_indices = @transform_1, window_bounds = array<i64: 128, 128>}, {pipeline_mode = #tpu.pipeline_mode<synchronous>, transform_indices = @transform_2, window_bounds = array<i64: 1, 128>}, {pipeline_mode = #tpu.pipeline_mode<synchronous>, transform_indices = @transform_3, window_bounds = array<i64: 128, 128>}, {pipeline_mode = #tpu.pipeline_mode<synchronous>, transform_indices = @transform_4, window_bounds = array<i64: 1, 128>}, {pipeline_mode = #tpu.pipeline_mode<synchronous>, transform_indices = @transform_5, window_bounds = array<i64: 128, 128>}, {pipeline_mode = #tpu.pipeline_mode<synchronous>, transform_indices = @transform_6, window_bounds = array<i64: 1, 128>}, {transform_indices = @transform_7, window_bounds = array<i64: 48, 128>}]} {
    %c0 = arith.constant 0 : index
    %c0_0 = arith.constant 0 : index
    %0 = vector.load %arg1[%c0, %c0_0] : memref<48x128xf32, #tpu.memory_space<vmem>>, vector<48x128xf32>
    %c0_1 = arith.constant 0 : index
    %c0_2 = arith.constant 0 : index
    %1 = vector.load %arg2[%c0_1, %c0_2] : memref<128x128xf32, #tpu.memory_space<vmem>>, vector<128x128xf32>
    %cst = arith.constant dense<0.000000e+00> : vector<48x128xf32>
    %2 = tpu.matmul %0, %1, %cst {dimension_numbers = #tpu.dot_dimension_numbers<[1], [0], [0], [1], [0, 0, 1, 1], [], []>} : vector<48x128xf32>, vector<128x128xf32>, vector<48x128xf32> -> vector<48x128xf32>
    %c0_3 = arith.constant 0 : index
    %c0_4 = arith.constant 0 : index
    %3 = vector.load %arg3[%c0_3, %c0_4] : memref<1x128xf32, #tpu.memory_space<vmem>>, vector<1x128xf32>
    %4 = vector.broadcast %3 : vector<1x128xf32> to vector<48x128xf32>
    %5 = arith.addf %2, %4 : vector<48x128xf32>
    %cst_5 = arith.constant 0.000000e+00 : f32
    %6 = vector.broadcast %cst_5 : f32 to vector<48x128xf32>
    %7 = arith.maximumf %5, %6 : vector<48x128xf32>
    %8 = math.absf %5 : vector<48x128xf32>
    %cst_6 = arith.constant 0.000000e+00 : f32
    %9 = vector.broadcast %cst_6 : f32 to vector<48x128xf32>
    %10 = arith.subf %9, %8 : vector<48x128xf32>
    %11 = math.exp %10 : vector<48x128xf32>
    %12 = math.log1p %11 : vector<48x128xf32>
    %13 = arith.addf %7, %12 : vector<48x128xf32>
    %c0_7 = arith.constant 0 : index
    %c0_8 = arith.constant 0 : index
    %14 = vector.load %arg4[%c0_7, %c0_8] : memref<128x128xf32, #tpu.memory_space<vmem>>, vector<128x128xf32>
    %cst_9 = arith.constant dense<0.000000e+00> : vector<48x128xf32>
    %15 = tpu.matmul %13, %14, %cst_9 {dimension_numbers = #tpu.dot_dimension_numbers<[1], [0], [0], [1], [0, 0, 1, 1], [], []>} : vector<48x128xf32>, vector<128x128xf32>, vector<48x128xf32> -> vector<48x128xf32>
    %c0_10 = arith.constant 0 : index
    %c0_11 = arith.constant 0 : index
    %16 = vector.load %arg5[%c0_10, %c0_11] : memref<1x128xf32, #tpu.memory_space<vmem>>, vector<1x128xf32>
    %17 = vector.broadcast %16 : vector<1x128xf32> to vector<48x128xf32>
    %18 = arith.addf %15, %17 : vector<48x128xf32>
    %cst_12 = arith.constant 0.000000e+00 : f32
    %19 = vector.broadcast %cst_12 : f32 to vector<48x128xf32>
    %20 = arith.maximumf %18, %19 : vector<48x128xf32>
    %21 = math.absf %18 : vector<48x128xf32>
    %cst_13 = arith.constant 0.000000e+00 : f32
    %22 = vector.broadcast %cst_13 : f32 to vector<48x128xf32>
    %23 = arith.subf %22, %21 : vector<48x128xf32>
    %24 = math.exp %23 : vector<48x128xf32>
    %25 = math.log1p %24 : vector<48x128xf32>
    %26 = arith.addf %20, %25 : vector<48x128xf32>
    %c0_14 = arith.constant 0 : index
    %c0_15 = arith.constant 0 : index
    %27 = vector.load %arg6[%c0_14, %c0_15] : memref<128x128xf32, #tpu.memory_space<vmem>>, vector<128x128xf32>
    %cst_16 = arith.constant dense<0.000000e+00> : vector<48x128xf32>
    %28 = tpu.matmul %26, %27, %cst_16 {dimension_numbers = #tpu.dot_dimension_numbers<[1], [0], [0], [1], [0, 0, 1, 1], [], []>} : vector<48x128xf32>, vector<128x128xf32>, vector<48x128xf32> -> vector<48x128xf32>
    %c0_17 = arith.constant 0 : index
    %c0_18 = arith.constant 0 : index
    %29 = vector.load %arg7[%c0_17, %c0_18] : memref<1x128xf32, #tpu.memory_space<vmem>>, vector<1x128xf32>
    %30 = vector.broadcast %29 : vector<1x128xf32> to vector<48x128xf32>
    %31 = arith.addf %28, %30 : vector<48x128xf32>
    %cst_19 = arith.constant 0.000000e+00 : f32
    %32 = vector.broadcast %cst_19 : f32 to vector<48x128xf32>
    %33 = arith.maximumf %31, %32 : vector<48x128xf32>
    %34 = math.absf %31 : vector<48x128xf32>
    %cst_20 = arith.constant 0.000000e+00 : f32
    %35 = vector.broadcast %cst_20 : f32 to vector<48x128xf32>
    %36 = arith.subf %35, %34 : vector<48x128xf32>
    %37 = math.exp %36 : vector<48x128xf32>
    %38 = math.log1p %37 : vector<48x128xf32>
    %39 = arith.addf %33, %38 : vector<48x128xf32>
    %c0_21 = arith.constant 0 : index
    %c0_22 = arith.constant 0 : index
    %40 = vector.load %arg8[%c0_21, %c0_22] : memref<48x128xf32, #tpu.memory_space<vmem>>, vector<48x128xf32>
    tpu.vector_store %arg8[%c0_21, %c0_22], %39 {strides = array<i32>} : memref<48x128xf32, #tpu.memory_space<vmem>>, vector<48x128xf32>,
    return
  }
  func.func @transform_0(%arg0: i32) -> (i32, i32) {
    %c0_i32 = arith.constant 0 : i32
    %c0_i32_0 = arith.constant 0 : i32
    return %arg0, %c0_i32 : i32, i32
  }
  func.func @transform_1(%arg0: i32) -> (i32, i32) {
    %c0_i32 = arith.constant 0 : i32
    %c0_i32_0 = arith.constant 0 : i32
    %c0_i32_1 = arith.constant 0 : i32
    return %c0_i32, %c0_i32_0 : i32, i32
  }
  func.func @transform_2(%arg0: i32) -> (i32, i32) {
    %c0_i32 = arith.constant 0 : i32
    %c0_i32_0 = arith.constant 0 : i32
    %c0_i32_1 = arith.constant 0 : i32
    return %c0_i32, %c0_i32_0 : i32, i32
  }
  func.func @transform_3(%arg0: i32) -> (i32, i32) {
    %c0_i32 = arith.constant 0 : i32
    %c0_i32_0 = arith.constant 0 : i32
    %c0_i32_1 = arith.constant 0 : i32
    return %c0_i32, %c0_i32_0 : i32, i32
  }
  func.func @transform_4(%arg0: i32) -> (i32, i32) {
    %c0_i32 = arith.constant 0 : i32
    %c0_i32_0 = arith.constant 0 : i32
    %c0_i32_1 = arith.constant 0 : i32
    return %c0_i32, %c0_i32_0 : i32, i32
  }
  func.func @transform_5(%arg0: i32) -> (i32, i32) {
    %c0_i32 = arith.constant 0 : i32
    %c0_i32_0 = arith.constant 0 : i32
    %c0_i32_1 = arith.constant 0 : i32
    return %c0_i32, %c0_i32_0 : i32, i32
  }
  func.func @transform_6(%arg0: i32) -> (i32, i32) {
    %c0_i32 = arith.constant 0 : i32
    %c0_i32_0 = arith.constant 0 : i32
    %c0_i32_1 = arith.constant 0 : i32
    return %c0_i32, %c0_i32_0 : i32, i32
  }
  func.func @transform_7(%arg0: i32) -> (i32, i32) {
    %c0_i32 = arith.constant 0 : i32
    %c0_i32_0 = arith.constant 0 : i32
    return %arg0, %c0_i32 : i32, i32
  }
}

</mosaic_0001>

<llo_original>
// kernel: tpu_custom_call.1
$region0: #{tpu_custom_call.1}
  #allocation0 [shape = 'u32[]', space=smem, size = 0x4, offset = 0x4, fixed_abs, tag = 'smem constant byte address 0x4 - core index']
  #allocation1 [shape = 'u32[144,128]{1,0:T(1,128)}', space=vmem, size = 0x12000, scoped, tag = 'internal scratch']
  %s0 = inlined_call_operand.hbm [shape: f32[96,128], index: 0, kind: input, shape index: {}]
  %s1 = inlined_call_operand.hbm [shape: f32[128,128], index: 1, kind: input, shape index: {}]
  %s2 = inlined_call_operand.vmem [shape: f32[1,128], index: 2, kind: input, shape index: {}]
  %s3 = inlined_call_operand.hbm [shape: f32[128,128], index: 3, kind: input, shape index: {}]
  %s4 = inlined_call_operand.vmem [shape: f32[1,128], index: 4, kind: input, shape index: {}]
  %s5 = inlined_call_operand.hbm [shape: f32[128,128], index: 5, kind: input, shape index: {}]
  %s6 = inlined_call_operand.vmem [shape: f32[1,128], index: 6, kind: input, shape index: {}]
  %s7 = inlined_call_operand.hbm [shape: f32[96,128], index: 7, kind: output, shape index: {}]
  %s8 = sld [smem:[#allocation0]]
  $region77: #{tpu_custom_call.1} parent=0
    _
  %s10 = ssub.s32 1, %s8
  %s11 = scalar_select 0, %s10, %s8
  $region1: #{tpu_custom_call.1} parent=0
    #allocation2 [shape = 'u8[49152]{0}', space=vmem, size = 0xc000, scoped, tag = 'input window, operand 0']
    #allocation3 [shape = 's32[2]{0}', space=sflag, size = 0x8, scoped, tag = 'scoped memory for tpu_custom_call.1']
    #allocation4 [shape = 's32[2]{0}', space=sflag, size = 0x8, scoped, tag = 'scoped memory for tpu_custom_call.1']
    #allocation5 [shape = 'u8[65536]{0}', space=vmem, size = 0x10000, scoped, tag = 'input window, operand 1, single buffered']
    #allocation6 [shape = 's32[1]{0}', space=sflag, size = 0x4, scoped, tag = 'scoped memory for tpu_custom_call.1']
    #allocation7 [shape = 'u8[65536]{0}', space=vmem, size = 0x10000, scoped, tag = 'input window, operand 3, single buffered']
    #allocation8 [shape = 'u8[65536]{0}', space=vmem, size = 0x10000, scoped, tag = 'input window, operand 5, single buffered']
    #allocation9 [shape = 's32[1]{0}', space=sflag, size = 0x4, scoped, tag = 'scoped memory for tpu_custom_call.1']
    #allocation10 [shape = 'u8[49152]{0}', space=vmem, size = 0xc000, scoped, tag = 'output window, operand 0']
    %12 = vsyncpa [#allocation3], 0
    %s13 = scalar_lea.sflag [#allocation3], 1
    %14 = vsyncpa %s13, 0
    %15 = vsyncpa [#allocation6], 0
    %16 = vsyncpa [#allocation9], 0
    %17 = vsyncpa [#allocation4], 0
    %s18 = scalar_lea.sflag [#allocation4], 1
    %19 = vsyncpa %s18, 0
    loop: start=0, step=1, limit=4
    $region2: #{tpu_custom_call.1} parent=1 // loop_pre_header
      _
    $region3: #{tpu_custom_call.1} parent=1 // loop_header
      %s21 = sphi 0, %s25
      %p22 = scmp.ge.s32.totalorder %s21, 4
      %s31 = sphi 0, %s33
      %s34 = sphi 0, %s31
      %s35 = sphi 0, %s34
      %s51 = sphi 0, %s35
      %s55 = sphi 0, %s55
      %s57 = sphi 0, %s55
      %s58 = sphi 0, %s57
      %s72 = sphi 0, %s58
      %s76 = sphi 0, %s76
      %s78 = sphi 0, %s76
      %s79 = sphi 0, %s78
      %s93 = sphi 0, %s79
      %s97 = sphi 0, %s97
      %s99 = sphi 0, %s97
      %s100 = sphi 0, %s99
      %s114 = sphi 0, %s100
      %s118 = sphi 0, %s118
      %s120 = sphi 0, %s118
      %s121 = sphi 0, %s120
      %s135 = sphi 0, %s121
      %s139 = sphi 0, %s139
      %s141 = sphi 0, %s139
      %s142 = sphi 0, %s141
      %s156 = sphi 0, %s142
      %s160 = sphi 0, %s160
      %s162 = sphi 0, %s160
      %s163 = sphi 0, %s162
      %s177 = sphi 0, %s163
      %s183 = sphi 0, %s185
      %s186 = sphi 0, %s183
      %s187 = sphi 0, %s186
      %s203 = sphi 0, %s187
    $region4: #{tpu_custom_call.1} parent=1 // loop_header_branch
      %24 = sbr.rel (%p22) target = $region8
    $region5: #{tpu_custom_call.1} parent=1 // loop_body
      %s26 = ssub.s32 %s21, 1
      %s27 = ssub.s32 %s21, 2
      %s28 = sadd.s32 %s21, 1
      %s29 = ssub.s32 %s21, %s28
      %p30 = scmp.eq.s32.totalorder %s29, 0
      %s32 = sadd.s32 %s31, 1
      %s33 = scalar_select %p30, %s31, %s32
      %p36 = pneg %p30
      %p37 = scmp.eq.s32.totalorder %s21, 1
      %p38 = por %p36, %p37
      %p39 = scmp.ne.s32.totalorder %s31, %s34
      %p40 = scmp.eq.s32.totalorder %s21, 0
      %p41 = por %p39, %p40
      %p42 = scmp.ne.s32.totalorder %s31, %s34
      %p43 = scmp.eq.s32.totalorder %s26, 1
      %p44 = por %p42, %p43
      %p45 = scmp.ne.s32.totalorder %s34, %s35
      %p46 = scmp.eq.s32.totalorder %s26, 0
      %p47 = por %p45, %p46
      %p48 = scmp.ne.s32.totalorder %s34, %s35
      %p49 = scmp.eq.s32.totalorder %s27, 1
      %p50 = por %p48, %p49
      %p52 = scmp.ne.s32.totalorder %s35, %s51
      %p53 = scmp.eq.s32.totalorder %s27, 0
      %p54 = por %p52, %p53
      %s56 = sadd.s32 %s55, 1
      %p59 = scmp.eq.s32.totalorder %s21, 1
      %p60 = scmp.ne.s32.totalorder %s55, %s57
      %p61 = scmp.eq.s32.totalorder %s21, 0
      %p62 = por %p60, %p61
      %p63 = scmp.ne.s32.totalorder %s55, %s57
      %p64 = scmp.eq.s32.totalorder %s26, 1
      %p65 = por %p63, %p64
      %p66 = scmp.ne.s32.totalorder %s57, %s58
      %p67 = scmp.eq.s32.totalorder %s26, 0
      %p68 = por %p66, %p67
      %p69 = scmp.ne.s32.totalorder %s57, %s58
      %p70 = scmp.eq.s32.totalorder %s27, 1
      %p71 = por %p69, %p70
      %p73 = scmp.ne.s32.totalorder %s58, %s72
      %p74 = scmp.eq.s32.totalorder %s27, 0
      %p75 = por %p73, %p74
      %s77 = sadd.s32 %s76, 1
      %p80 = scmp.eq.s32.totalorder %s21, 1
      %p81 = scmp.ne.s32.totalorder %s76, %s78
      %p82 = scmp.eq.s32.totalorder %s21, 0
      %p83 = por %p81, %p82
      %p84 = scmp.ne.s32.totalorder %s76, %s78
      %p85 = scmp.eq.s32.totalorder %s26, 1
      %p86 = por %p84, %p85
      %p87 = scmp.ne.s32.totalorder %s78, %s79
      %p88 = scmp.eq.s32.totalorder %s26, 0
      %p89 = por %p87, %p88
      %p90 = scmp.ne.s32.totalorder %s78, %s79
      %p91 = scmp.eq.s32.totalorder %s27, 1
      %p92 = por %p90, %p91
      %p94 = scmp.ne.s32.totalorder %s79, %s93
      %p95 = scmp.eq.s32.totalorder %s27, 0
      %p96 = por %p94, %p95
      %s98 = sadd.s32 %s97, 1
      %p101 = scmp.eq.s32.totalorder %s21, 1
      %p102 = scmp.ne.s32.totalorder %s97, %s99
      %p103 = scmp.eq.s32.totalorder %s21, 0
      %p104 = por %p102, %p103
      %p105 = scmp.ne.s32.totalorder %s97, %s99
      %p106 = scmp.eq.s32.totalorder %s26, 1
      %p107 = por %p105, %p106
      %p108 = scmp.ne.s32.totalorder %s99, %s100
      %p109 = scmp.eq.s32.totalorder %s26, 0
      %p110 = por %p108, %p109
      %p111 = scmp.ne.s32.totalorder %s99, %s100
      %p112 = scmp.eq.s32.totalorder %s27, 1
      %p113 = por %p111, %p112
      %p115 = scmp.ne.s32.totalorder %s100, %s114
      %p116 = scmp.eq.s32.totalorder %s27, 0
      %p117 = por %p115, %p116
      %s119 = sadd.s32 %s118, 1
      %p122 = scmp.eq.s32.totalorder %s21, 1
      %p123 = scmp.ne.s32.totalorder %s118, %s120
      %p124 = scmp.eq.s32.totalorder %s21, 0
      %p125 = por %p123, %p124
      %p126 = scmp.ne.s32.totalorder %s118, %s120
      %p127 = scmp.eq.s32.totalorder %s26, 1
      %p128 = por %p126, %p127
      %p129 = scmp.ne.s32.totalorder %s120, %s121
      %p130 = scmp.eq.s32.totalorder %s26, 0
      %p131 = por %p129, %p130
      %p132 = scmp.ne.s32.totalorder %s120, %s121
      %p133 = scmp.eq.s32.totalorder %s27, 1
      %p134 = por %p132, %p133
      %p136 = scmp.ne.s32.totalorder %s121, %s135
      %p137 = scmp.eq.s32.totalorder %s27, 0
      %p138 = por %p136, %p137
      %s140 = sadd.s32 %s139, 1
      %p143 = scmp.eq.s32.totalorder %s21, 1
      %p144 = scmp.ne.s32.totalorder %s139, %s141
      %p145 = scmp.eq.s32.totalorder %s21, 0
      %p146 = por %p144, %p145
      %p147 = scmp.ne.s32.totalorder %s139, %s141
      %p148 = scmp.eq.s32.totalorder %s26, 1
      %p149 = por %p147, %p148
      %p150 = scmp.ne.s32.totalorder %s141, %s142
      %p151 = scmp.eq.s32.totalorder %s26, 0
      %p152 = por %p150, %p151
      %p153 = scmp.ne.s32.totalorder %s141, %s142
      %p154 = scmp.eq.s32.totalorder %s27, 1
      %p155 = por %p153, %p154
      %p157 = scmp.ne.s32.totalorder %s142, %s156
      %p158 = scmp.eq.s32.totalorder %s27, 0
      %p159 = por %p157, %p158
      %s161 = sadd.s32 %s160, 1
      %p164 = scmp.eq.s32.totalorder %s21, 1
      %p165 = scmp.ne.s32.totalorder %s160, %s162
      %p166 = scmp.eq.s32.totalorder %s21, 0
      %p167 = por %p165, %p166
      %p168 = scmp.ne.s32.totalorder %s160, %s162
      %p169 = scmp.eq.s32.totalorder %s26, 1
      %p170 = por %p168, %p169
      %p171 = scmp.ne.s32.totalorder %s162, %s163
      %p172 = scmp.eq.s32.totalorder %s26, 0
      %p173 = por %p171, %p172
      %p174 = scmp.ne.s32.totalorder %s162, %s163
      %p175 = scmp.eq.s32.totalorder %s27, 1
      %p176 = por %p174, %p175
      %p178 = scmp.ne.s32.totalorder %s163, %s177
      %p179 = scmp.eq.s32.totalorder %s27, 0
      %p180 = por %p178, %p179
      %s181 = ssub.s32 %s21, %s28
      %p182 = scmp.eq.s32.totalorder %s181, 0
      %s184 = sadd.s32 %s183, 1
      %s185 = scalar_select %p182, %s183, %s184
      %p188 = pneg %p182
      %p189 = scmp.eq.s32.totalorder %s21, 1
      %p190 = por %p188, %p189
      %p191 = scmp.ne.s32.totalorder %s183, %s186
      %p192 = scmp.eq.s32.totalorder %s21, 0
      %p193 = por %p191, %p192
      %p194 = scmp.ne.s32.totalorder %s183, %s186
      %p195 = scmp.eq.s32.totalorder %s26, 1
      %p196 = por %p194, %p195
      %p197 = scmp.ne.s32.totalorder %s186, %s187
      %p198 = scmp.eq.s32.totalorder %s26, 0
      %p199 = por %p197, %p198
      %p200 = scmp.ne.s32.totalorder %s186, %s187
      %p201 = scmp.eq.s32.totalorder %s27, 1
      %p202 = por %p200, %p201
      %p204 = scmp.ne.s32.totalorder %s187, %s203
      %p205 = scmp.eq.s32.totalorder %s27, 0
      %p206 = por %p204, %p205
      %p207 = scmp.le.s32.totalorder 1, %s21
      %p208 = scmp.lt.s32.totalorder %s21, 3
      %p209 = pnand %p207, %p208
      %p210 = pneg %p209
      // Predicated region
      $region9: #{tpu_custom_call.1} parent=5 // pred_check
        _
      $region10: #{tpu_custom_call.1} parent=5 // pred_check_branch
        %212 = sbr.rel (%p209) target = $region12
      $region11: #{tpu_custom_call.1} parent=5 // pred_region
        %s213 = ssub.s32 %s21, 1
        // Predicated region
        $region13: #{tpu_custom_call.1} parent=11 // pred_check
          %p214 = pneg %p68
        $region14: #{tpu_custom_call.1} parent=11 // pred_check_branch
          %216 = sbr.rel (%p214) target = $region16
        $region15: #{tpu_custom_call.1} parent=11 // pred_region
          %s218 = ssub.s32 2048, 2048
          %219 = vsyncadd [#allocation6], %s218
          %s220 = sshll.u32 [#allocation5], 4
          %s221 = int_to_ptr.vmem [resolvable:$true] %s220
          %226 = dma.hbm_to_vmem [thread:$0]  %s1, 2048, %s221, [#allocation6], 128, 128, 8
        $region16: #{tpu_custom_call.1} parent=11 // pred_fallthru
          _
        // Predicated region
        $region17: #{tpu_custom_call.1} parent=11 // pred_check
          %p227 = pneg %p89
        $region18: #{tpu_custom_call.1} parent=11 // pred_check_branch
          %229 = sbr.rel (%p227) target = $region20
        $region19: #{tpu_custom_call.1} parent=11 // pred_region
          _
        $region20: #{tpu_custom_call.1} parent=11 // pred_fallthru
          _
        // Predicated region
        $region21: #{tpu_custom_call.1} parent=11 // pred_check
          %p230 = pneg %p110
        $region22: #{tpu_custom_call.1} parent=11 // pred_check_branch
          %232 = sbr.rel (%p230) target = $region24
        $region23: #{tpu_custom_call.1} parent=11 // pred_region
          %s234 = ssub.s32 2048, 2048
          %235 = vsyncadd [#allocation6], %s234
          %s236 = sshll.u32 [#allocation7], 4
          %s237 = int_to_ptr.vmem [resolvable:$true] %s236
          %242 = dma.hbm_to_vmem [thread:$0]  %s3, 2048, %s237, [#allocation6], 128, 128, 8
        $region24: #{tpu_custom_call.1} parent=11 // pred_fallthru
          _
        // Predicated region
        $region25: #{tpu_custom_call.1} parent=11 // pred_check
          %p243 = pneg %p131
        $region26: #{tpu_custom_call.1} parent=11 // pred_check_branch
          %245 = sbr.rel (%p243) target = $region28
        $region27: #{tpu_custom_call.1} parent=11 // pred_region
          _
        $region28: #{tpu_custom_call.1} parent=11 // pred_fallthru
          _
        // Predicated region
        $region29: #{tpu_custom_call.1} parent=11 // pred_check
          %p246 = pneg %p152
        $region30: #{tpu_custom_call.1} parent=11 // pred_check_branch
          %248 = sbr.rel (%p246) target = $region32
        $region31: #{tpu_custom_call.1} parent=11 // pred_region
          %s250 = ssub.s32 2048, 2048
          %251 = vsyncadd [#allocation9], %s250
          %s252 = sshll.u32 [#allocation8], 4
          %s253 = int_to_ptr.vmem [resolvable:$true] %s252
          %258 = dma.hbm_to_vmem [thread:$0]  %s5, 2048, %s253, [#allocation9], 128, 128, 8
        $region32: #{tpu_custom_call.1} parent=11 // pred_fallthru
          _
        // Predicated region
        $region33: #{tpu_custom_call.1} parent=11 // pred_check
          %p259 = pneg %p173
        $region34: #{tpu_custom_call.1} parent=11 // pred_check_branch
          %261 = sbr.rel (%p259) target = $region36
        $region35: #{tpu_custom_call.1} parent=11 // pred_region
          _
        $region36: #{tpu_custom_call.1} parent=11 // pred_fallthru
          _
      $region12: #{tpu_custom_call.1} parent=5 // pred_fallthru
        _
      %p262 = scmp.lt.s32.totalorder %s21, 2
      // Predicated region
      $region37: #{tpu_custom_call.1} parent=5 // pred_check
        %p263 = pneg %p262
      $region38: #{tpu_custom_call.1} parent=5 // pred_check_branch
        %265 = sbr.rel (%p263) target = $region40
      $region39: #{tpu_custom_call.1} parent=5 // pred_region
        // Predicated region
        $region41: #{tpu_custom_call.1} parent=39 // pred_check
          %p266 = pneg %p41
        $region42: #{tpu_custom_call.1} parent=39 // pred_check_branch
          %268 = sbr.rel (%p266) target = $region44
        $region43: #{tpu_custom_call.1} parent=39 // pred_region
          %s269 = sand.u32 %s31, 1
          %s270 = scalar_lea.sflag [#allocation3], %s269
          %s271 = sand.u32 %s31, 1
          %s272 = smul.addr %s271, 48
          %s273 = scalar_lea.vmem [#allocation2], %s272
          %s274 = smul.u32 6, %s21
          %s276 = ssub.s32 768, 768
          %277 = vsyncadd %s270, %s276
          %s278 = smul.addr %s274, 128
          %s279 = scalar_lea.hbm %s0, %s278
          %s280 = sshll.u32 %s273, 4
          %s281 = int_to_ptr.vmem [resolvable:$true] %s280
          %286 = dma.hbm_to_vmem [thread:$0]  %s279, 768, %s281, %s270, 128, 128, 8
        $region44: #{tpu_custom_call.1} parent=39 // pred_fallthru
          _
      $region40: #{tpu_custom_call.1} parent=5 // pred_fallthru
        _
      %p287 = scmp.le.s32.totalorder 1, %s21
      %p288 = scmp.lt.s32.totalorder %s21, 3
      %p289 = pnand %p287, %p288
      %p290 = pneg %p289
      // Predicated region
      $region45: #{tpu_custom_call.1} parent=5 // pred_check
        _
      $region46: #{tpu_custom_call.1} parent=5 // pred_check_branch
        %292 = sbr.rel (%p289) target = $region48
      $region47: #{tpu_custom_call.1} parent=5 // pred_region
        %s293 = ssub.s32 %s21, 1
        %s294 = sand.u32 %s34, 1
        %s295 = scalar_lea.sflag [#allocation3], %s294
        %s296 = sand.u32 %s34, 1
        %s297 = smul.addr %s296, 48
        %s298 = scalar_lea.vmem [#allocation2], %s297
        // Predicated region
        $region49: #{tpu_custom_call.1} parent=47 // pred_check
          %p299 = pneg %p47
        $region50: #{tpu_custom_call.1} parent=47 // pred_check_branch
          %301 = sbr.rel (%p299) target = $region52
        $region51: #{tpu_custom_call.1} parent=47 // pred_region
          %302 = dma.done %s295, 768
        $region52: #{tpu_custom_call.1} parent=47 // pred_fallthru
          _
        // Predicated region
        $region53: #{tpu_custom_call.1} parent=47 // pred_check
          %p303 = pneg %p68
        $region54: #{tpu_custom_call.1} parent=47 // pred_check_branch
          %305 = sbr.rel (%p303) target = $region56
        $region55: #{tpu_custom_call.1} parent=47 // pred_region
          %306 = dma.done [#allocation6], 2048
        $region56: #{tpu_custom_call.1} parent=47 // pred_fallthru
          _
        // Predicated region
        $region57: #{tpu_custom_call.1} parent=47 // pred_check
          %p307 = pneg %p110
        $region58: #{tpu_custom_call.1} parent=47 // pred_check_branch
          %309 = sbr.rel (%p307) target = $region60
        $region59: #{tpu_custom_call.1} parent=47 // pred_region
          %310 = dma.done [#allocation6], 2048
        $region60: #{tpu_custom_call.1} parent=47 // pred_fallthru
          _
        // Predicated region
        $region61: #{tpu_custom_call.1} parent=47 // pred_check
          %p311 = pneg %p152
        $region62: #{tpu_custom_call.1} parent=47 // pred_check_branch
          %313 = sbr.rel (%p311) target = $region64
        $region63: #{tpu_custom_call.1} parent=47 // pred_region
          %314 = dma.done [#allocation9], 2048
        $region64: #{tpu_custom_call.1} parent=47 // pred_fallthru
          _
        %s315 = sand.u32 %s34, 1
        %s316 = scalar_lea.sflag [#allocation3], %s315
        %s317 = sand.u32 %s34, 1
        %s318 = smul.addr %s317, 48
        %s319 = scalar_lea.vmem [#allocation2], %s318
        %p320 = pneg %p47
        %p321 = pneg %p44
        %p322 = pneg %p68
        %p323 = pneg %p65
        %p324 = pneg %p89
        %p325 = pneg %p86
        %p326 = pneg %p110
        %p327 = pneg %p107
        %p328 = pneg %p131
        %p329 = pneg %p128
        %p330 = pneg %p152
        %p331 = pneg %p149
        %p332 = pneg %p173
        %p333 = pneg %p170
        %p334 = pneg %p199
        %p335 = pneg %p196
        %s336 = sand.u32 %s186, 1
        %s337 = scalar_lea.sflag [#allocation4], %s336
        %s338 = sand.u32 %s186, 1
        %s339 = smul.addr %s338, 48
        %s340 = scalar_lea.vmem [#allocation10], %s339
        %s341 = smul.u32 6, %s26
        %s342 = smul.u32 6, %s26
        %v343 = vld [vmem:[%s298] sm:$0xff]
        %v344 = vld [vmem:[%s298 + $0x8] sm:$0xff]
        %v345 = vld [vmem:[%s298 + $0x10] sm:$0xff]
        %v346 = vld [vmem:[%s298 + $0x18] sm:$0xff]
        %v347 = vld [vmem:[%s298 + $0x20] sm:$0xff]
        %v348 = vld [vmem:[%s298 + $0x28] sm:$0xff]
        %v349 = vld [vmem:[#allocation5] sm:$0xff]
        %v350 = vld [vmem:[#allocation5 + $0x8] sm:$0xff]
        %v351 = vld [vmem:[#allocation5 + $0x10] sm:$0xff]
        %v352 = vld [vmem:[#allocation5 + $0x18] sm:$0xff]
        %v353 = vld [vmem:[#allocation5 + $0x20] sm:$0xff]
        %v354 = vld [vmem:[#allocation5 + $0x28] sm:$0xff]
        %v355 = vld [vmem:[#allocation5 + $0x30] sm:$0xff]
        %v356 = vld [vmem:[#allocation5 + $0x38] sm:$0xff]
        %v357 = vld [vmem:[#allocation5 + $0x40] sm:$0xff]
        %v358 = vld [vmem:[#allocation5 + $0x48] sm:$0xff]
        %v359 = vld [vmem:[#allocation5 + $0x50] sm:$0xff]
        %v360 = vld [vmem:[#allocation5 + $0x58] sm:$0xff]
        %v361 = vld [vmem:[#allocation5 + $0x60] sm:$0xff]
        %v362 = vld [vmem:[#allocation5 + $0x68] sm:$0xff]
        %v363 = vld [vmem:[#allocation5 + $0x70] sm:$0xff]
        %v364 = vld [vmem:[#allocation5 + $0x78] sm:$0xff]
        %v365 = vld [vmem:[%s2] sm:$0x1]
        %v367 = vlaneseq
        %v368 = vshrl.u32 %v367, 7
        %v369 = vsub.s32 0, %v368
        %v370 = vrot.slane %v365, %v369
        %372 = vmatprep.subr.mxu0 0.0
        %373 = vmatpush1.msra.mxu0 %v349
        %374 = vmatprep.subr.mxu0 0.0
        %375 = vmatpush1.msra.mxu0 %v350
        %376 = vmatprep.subr.mxu0 0.0
        %377 = vmatpush1.msra.mxu0 %v351
        %378 = vmatprep.subr.mxu0 0.0
        %379 = vmatpush1.msra.mxu0 %v352
        %380 = vmatprep.subr.mxu0 0.0
        %381 = vmatpush1.msra.mxu0 %v353
        %382 = vmatprep.subr.mxu0 0.0
        %383 = vmatpush1.msra.mxu0 %v354
        %384 = vmatprep.subr.mxu0 0.0
        %385 = vmatpush1.msra.mxu0 %v355
        %386 = vmatprep.subr.mxu0 0.0
        %387 = vmatpush1.msra.mxu0 %v356
        %388 = vmatprep.subr.mxu0 0.0
        %389 = vmatpush1.msra.mxu0 %v357
        %390 = vmatprep.subr.mxu0 0.0
        %391 = vmatpush1.msra.mxu0 %v358
        %392 = vmatprep.subr.mxu0 0.0
        %393 = vmatpush1.msra.mxu0 %v359
        %394 = vmatprep.subr.mxu0 0.0
        %395 = vmatpush1.msra.mxu0 %v360
        %396 = vmatprep.subr.mxu0 0.0
        %397 = vmatpush1.msra.mxu0 %v361
        %398 = vmatprep.subr.mxu0 0.0
        %399 = vmatpush1.msra.mxu0 %v362
        %400 = vmatprep.subr.mxu0 0.0
        %401 = vmatpush1.msra.mxu0 %v363
        %402 = vmatprep.subr.mxu0 0.0
        %403 = vmatpush1.msra.mxu0 %v364
        %404 = vmatprep.subr.mxu0 0.0
        %405 = vmatpush1.msra.mxu0 0.0
        %406 = vmatprep.subr.mxu0 0.0
        %407 = vmatpush1.msra.mxu0 0.0
        %408 = vmatprep.subr.mxu0 0.0
        %409 = vmatpush1.msra.mxu0 0.0
        %410 = vmatprep.subr.mxu0 0.0
        %411 = vmatpush1.msra.mxu0 0.0
        %412 = vmatprep.subr.mxu0 0.0
        %413 = vmatpush1.msra.mxu0 0.0
        %414 = vmatprep.subr.mxu0 0.0
        %415 = vmatpush1.msra.mxu0 0.0
        %416 = vmatprep.subr.mxu0 0.0
        %417 = vmatpush1.msra.mxu0 0.0
        %418 = vmatprep.subr.mxu0 0.0
        %419 = vmatpush1.msra.mxu0 0.0
        %420 = vmatprep.subr.mxu0 0.0
        %421 = vmatpush1.msra.mxu0 0.0
        %422 = vmatprep.subr.mxu0 0.0
        %423 = vmatpush1.msra.mxu0 0.0
        %424 = vmatprep.subr.mxu0 0.0
        %425 = vmatpush1.msra.mxu0 0.0
        %426 = vmatprep.subr.mxu0 0.0
        %427 = vmatpush1.msra.mxu0 0.0
        %428 = vmatprep.subr.mxu0 0.0
        %429 = vmatpush1.msra.mxu0 0.0
        %430 = vmatprep.subr.mxu0 0.0
        %431 = vmatpush1.msra.mxu0 0.0
        %432 = vmatprep.subr.mxu0 0.0
        %433 = vmatpush1.msra.mxu0 0.0
        %434 = vmatprep.subr.mxu0 0.0
        %435 = vmatpush1.msra.mxu0 0.0
        %436 = vmatprep.mubr.f32.mxu0 0.0
        %437 = vmatmul.mubr.f32.gmra.mrb[0].mxu0 %v343
        %v438 = vpop.f32.mrb[0].mxu0
        %v439 = vadd.f32 %v370, %v438
        %v440 = vpop.f32.mrb[0].mxu0
        %441 = vmatprep.mubr.f32.mxu0 0.0
        %442 = vmatmul.mubr.f32.gmra.mrb[0].mxu0 %v344
        %v443 = vpop.f32.mrb[0].mxu0
        %v444 = vadd.f32 %v370, %v443
        %v445 = vpop.f32.mrb[0].mxu0
        %446 = vmatprep.mubr.f32.mxu0 0.0
        %447 = vmatmul.mubr.f32.gmra.mrb[0].mxu0 %v345
        %v448 = vpop.f32.mrb[0].mxu0
        %v449 = vadd.f32 %v370, %v448
        %v450 = vpop.f32.mrb[0].mxu0
        %451 = vmatprep.mubr.f32.mxu0 0.0
        %452 = vmatmul.mubr.f32.gmra.mrb[0].mxu0 %v346
        %v453 = vpop.f32.mrb[0].mxu0
        %v454 = vadd.f32 %v370, %v453
        %v455 = vpop.f32.mrb[0].mxu0
        %456 = vmatprep.mubr.f32.mxu0 0.0
        %457 = vmatmul.mubr.f32.gmra.mrb[0].mxu0 %v347
        %v458 = vpop.f32.mrb[0].mxu0
        %v459 = vadd.f32 %v370, %v458
        %v460 = vpop.f32.mrb[0].mxu0
        %461 = vmatprep.mubr.f32.mxu0 0.0
        %462 = vmatmul.mubr.f32.gmra.mrb[0].mxu0 %v348
        %v463 = vpop.f32.mrb[0].mxu0
        %v464 = vadd.f32 %v370, %v463
        %v465 = vpop.f32.mrb[0].mxu0
        %466 = vdwg.mxu0
        %v467 = vmax.f32 %v439, 0.0
        %v468 = vmax.f32 %v444, 0.0
        %v469 = vmax.f32 %v449, 0.0
        %v470 = vmax.f32 %v454, 0.0
        %v471 = vmax.f32 %v459, 0.0
        %v472 = vmax.f32 %v464, 0.0
        %v473 = vand.u32 2147483647, %v439
        %v474 = vand.u32 2147483647, %v444
        %v475 = vand.u32 2147483647, %v449
        %v476 = vand.u32 2147483647, %v454
        %v477 = vand.u32 2147483647, %v459
        %v478 = vand.u32 2147483647, %v464
        %v479 = vsub.f32 0.0, %v473
        %v480 = vsub.f32 0.0, %v474
        %v481 = vsub.f32 0.0, %v475
        %v482 = vsub.f32 0.0, %v476
        %v483 = vsub.f32 0.0, %v477
        %v484 = vsub.f32 0.0, %v478
        %v485 = vmul.f32 %v479, 1.442695
        %v486 = vpow.pop %v485
        %v487 = vmul.f32 %v480, 1.442695
        %v488 = vpow.pop %v487
        %v489 = vmul.f32 %v481, 1.442695
        %v490 = vpow.pop %v489
        %v491 = vmul.f32 %v482, 1.442695
        %v492 = vpow.pop %v491
        %v493 = vmul.f32 %v483, 1.442695
        %v494 = vpow.pop %v493
        %v495 = vmul.f32 %v484, 1.442695
        %v496 = vpow.pop %v495
        %v497 = vadd.f32 %v486, 1.0
        %v498 = vlog2.pop %v497
        %v499 = vmul.f32 %v498, 0.6931472
        %v500 = vmul.f32 -0.5, %v486
        %v501 = vadd.f32 %v500, 1.0
        %v502 = vmul.f32 %v501, %v486
        %v503 = vand.u32 2147483647, %v486
        %vm504 = vcmp.lt.f32.partialorder %v503, 0.0004427343
        %v505 = vsel %vm504, %v502, %v499
        %v506 = vadd.f32 %v488, 1.0
        %v507 = vlog2.pop %v506
        %v508 = vmul.f32 %v507, 0.6931472
        %v509 = vmul.f32 -0.5, %v488
        %v510 = vadd.f32 %v509, 1.0
        %v511 = vmul.f32 %v510, %v488
        %v512 = vand.u32 2147483647, %v488
        %vm513 = vcmp.lt.f32.partialorder %v512, 0.0004427343
        %v514 = vsel %vm513, %v511, %v508
        %v515 = vadd.f32 %v490, 1.0
        %v516 = vlog2.pop %v515
        %v517 = vmul.f32 %v516, 0.6931472
        %v518 = vmul.f32 -0.5, %v490
        %v519 = vadd.f32 %v518, 1.0
        %v520 = vmul.f32 %v519, %v490
        %v521 = vand.u32 2147483647, %v490
        %vm522 = vcmp.lt.f32.partialorder %v521, 0.0004427343
        %v523 = vsel %vm522, %v520, %v517
        %v524 = vadd.f32 %v492, 1.0
        %v525 = vlog2.pop %v524
        %v526 = vmul.f32 %v525, 0.6931472
        %v527 = vmul.f32 -0.5, %v492
        %v528 = vadd.f32 %v527, 1.0
        %v529 = vmul.f32 %v528, %v492
        %v530 = vand.u32 2147483647, %v492
        %vm531 = vcmp.lt.f32.partialorder %v530, 0.0004427343
        %v532 = vsel %vm531, %v529, %v526
        %v533 = vadd.f32 %v494, 1.0
        %v534 = vlog2.pop %v533
        %v535 = vmul.f32 %v534, 0.6931472
        %v536 = vmul.f32 -0.5, %v494
        %v537 = vadd.f32 %v536, 1.0
        %v538 = vmul.f32 %v537, %v494
        %v539 = vand.u32 2147483647, %v494
        %vm540 = vcmp.lt.f32.partialorder %v539, 0.0004427343
        %v541 = vsel %vm540, %v538, %v535
        %v542 = vadd.f32 %v496, 1.0
        %v543 = vlog2.pop %v542
        %v544 = vmul.f32 %v543, 0.6931472
        %v545 = vmul.f32 -0.5, %v496
        %v546 = vadd.f32 %v545, 1.0
        %v547 = vmul.f32 %v546, %v496
        %v548 = vand.u32 2147483647, %v496
        %vm549 = vcmp.lt.f32.partialorder %v548, 0.0004427343
        %v550 = vsel %vm549, %v547, %v544
        %v551 = vadd.f32 %v467, %v505
        %v552 = vadd.f32 %v468, %v514
        %v553 = vadd.f32 %v469, %v523
        %v554 = vadd.f32 %v470, %v532
        %v555 = vadd.f32 %v471, %v541
        %v556 = vadd.f32 %v472, %v550
        %v557 = vld [vmem:[#allocation7] sm:$0xff]
        %v558 = vld [vmem:[#allocation7 + $0x8] sm:$0xff]
        %v559 = vld [vmem:[#allocation7 + $0x10] sm:$0xff]
        %v560 = vld [vmem:[#allocation7 + $0x18] sm:$0xff]
        %v561 = vld [vmem:[#allocation7 + $0x20] sm:$0xff]
        %v562 = vld [vmem:[#allocation7 + $0x28] sm:$0xff]
        %v563 = vld [vmem:[#allocation7 + $0x30] sm:$0xff]
        %v564 = vld [vmem:[#allocation7 + $0x38] sm:$0xff]
        %v565 = vld [vmem:[#allocation7 + $0x40] sm:$0xff]
        %v566 = vld [vmem:[#allocation7 + $0x48] sm:$0xff]
        %v567 = vld [vmem:[#allocation7 + $0x50] sm:$0xff]
        %v568 = vld [vmem:[#allocation7 + $0x58] sm:$0xff]
        %v569 = vld [vmem:[#allocation7 + $0x60] sm:$0xff]
        %v570 = vld [vmem:[#allocation7 + $0x68] sm:$0xff]
        %v571 = vld [vmem:[#allocation7 + $0x70] sm:$0xff]
        %v572 = vld [vmem:[#allocation7 + $0x78] sm:$0xff]
        %v573 = vld [vmem:[%s4] sm:$0x1]
        %v575 = vlaneseq
        %v576 = vshrl.u32 %v575, 7
        %v577 = vsub.s32 0, %v576
        %v578 = vrot.slane %v573, %v577
        %580 = vmatprep.subr.mxu0 0.0
        %581 = vmatpush1.msra.mxu0 %v557
        %582 = vmatprep.subr.mxu0 0.0
        %583 = vmatpush1.msra.mxu0 %v558
        %584 = vmatprep.subr.mxu0 0.0
        %585 = vmatpush1.msra.mxu0 %v559
        %586 = vmatprep.subr.mxu0 0.0
        %587 = vmatpush1.msra.mxu0 %v560
        %588 = vmatprep.subr.mxu0 0.0
        %589 = vmatpush1.msra.mxu0 %v561
        %590 = vmatprep.subr.mxu0 0.0
        %591 = vmatpush1.msra.mxu0 %v562
        %592 = vmatprep.subr.mxu0 0.0
        %593 = vmatpush1.msra.mxu0 %v563
        %594 = vmatprep.subr.mxu0 0.0
        %595 = vmatpush1.msra.mxu0 %v564
        %596 = vmatprep.subr.mxu0 0.0
        %597 = vmatpush1.msra.mxu0 %v565
        %598 = vmatprep.subr.mxu0 0.0
        %599 = vmatpush1.msra.mxu0 %v566
        %600 = vmatprep.subr.mxu0 0.0
        %601 = vmatpush1.msra.mxu0 %v567
        %602 = vmatprep.subr.mxu0 0.0
        %603 = vmatpush1.msra.mxu0 %v568
        %604 = vmatprep.subr.mxu0 0.0
        %605 = vmatpush1.msra.mxu0 %v569
        %606 = vmatprep.subr.mxu0 0.0
        %607 = vmatpush1.msra.mxu0 %v570
        %608 = vmatprep.subr.mxu0 0.0
        %609 = vmatpush1.msra.mxu0 %v571
        %610 = vmatprep.subr.mxu0 0.0
        %611 = vmatpush1.msra.mxu0 %v572
        %612 = vmatprep.subr.mxu0 0.0
        %613 = vmatpush1.msra.mxu0 0.0
        %614 = vmatprep.subr.mxu0 0.0
        %615 = vmatpush1.msra.mxu0 0.0
        %616 = vmatprep.subr.mxu0 0.0
        %617 = vmatpush1.msra.mxu0 0.0
        %618 = vmatprep.subr.mxu0 0.0
        %619 = vmatpush1.msra.mxu0 0.0
        %620 = vmatprep.subr.mxu0 0.0
        %621 = vmatpush1.msra.mxu0 0.0
        %622 = vmatprep.subr.mxu0 0.0
        %623 = vmatpush1.msra.mxu0 0.0
        %624 = vmatprep.subr.mxu0 0.0
        %625 = vmatpush1.msra.mxu0 0.0
        %626 = vmatprep.subr.mxu0 0.0
        %627 = vmatpush1.msra.mxu0 0.0
        %628 = vmatprep.subr.mxu0 0.0
        %629 = vmatpush1.msra.mxu0 0.0
        %630 = vmatprep.subr.mxu0 0.0
        %631 = vmatpush1.msra.mxu0 0.0
        %632 = vmatprep.subr.mxu0 0.0
        %633 = vmatpush1.msra.mxu0 0.0
        %634 = vmatprep.subr.mxu0 0.0
        %635 = vmatpush1.msra.mxu0 0.0
        %636 = vmatprep.subr.mxu0 0.0
        %637 = vmatpush1.msra.mxu0 0.0
        %638 = vmatprep.subr.mxu0 0.0
        %639 = vmatpush1.msra.mxu0 0.0
        %640 = vmatprep.subr.mxu0 0.0
        %641 = vmatpush1.msra.mxu0 0.0
        %642 = vmatprep.subr.mxu0 0.0
        %643 = vmatpush1.msra.mxu0 0.0
        %644 = vmatprep.mubr.f32.mxu0 0.0
        %645 = vmatmul.mubr.f32.gmra.mrb[0].mxu0 %v551
        %v646 = vpop.f32.mrb[0].mxu0
        %v647 = vadd.f32 %v578, %v646
        %v648 = vpop.f32.mrb[0].mxu0
        %649 = vmatprep.mubr.f32.mxu0 0.0
        %650 = vmatmul.mubr.f32.gmra.mrb[0].mxu0 %v552
        %v651 = vpop.f32.mrb[0].mxu0
        %v652 = vadd.f32 %v578, %v651
        %v653 = vpop.f32.mrb[0].mxu0
        %654 = vmatprep.mubr.f32.mxu0 0.0
        %655 = vmatmul.mubr.f32.gmra.mrb[0].mxu0 %v553
        %v656 = vpop.f32.mrb[0].mxu0
        %v657 = vadd.f32 %v578, %v656
        %v658 = vpop.f32.mrb[0].mxu0
        %659 = vmatprep.mubr.f32.mxu0 0.0
        %660 = vmatmul.mubr.f32.gmra.mrb[0].mxu0 %v554
        %v661 = vpop.f32.mrb[0].mxu0
        %v662 = vadd.f32 %v578, %v661
        %v663 = vpop.f32.mrb[0].mxu0
        %664 = vmatprep.mubr.f32.mxu0 0.0
        %665 = vmatmul.mubr.f32.gmra.mrb[0].mxu0 %v555
        %v666 = vpop.f32.mrb[0].mxu0
        %v667 = vadd.f32 %v578, %v666
        %v668 = vpop.f32.mrb[0].mxu0
        %669 = vmatprep.mubr.f32.mxu0 0.0
        %670 = vmatmul.mubr.f32.gmra.mrb[0].mxu0 %v556
        %v671 = vpop.f32.mrb[0].mxu0
        %v672 = vadd.f32 %v578, %v671
        %v673 = vpop.f32.mrb[0].mxu0
        %674 = vdwg.mxu0
        %v675 = vmax.f32 %v647, 0.0
        %v676 = vmax.f32 %v652, 0.0
        %v677 = vmax.f32 %v657, 0.0
        %v678 = vmax.f32 %v662, 0.0
        %v679 = vmax.f32 %v667, 0.0
        %v680 = vmax.f32 %v672, 0.0
        %v681 = vand.u32 2147483647, %v647
        %v682 = vand.u32 2147483647, %v652
        %v683 = vand.u32 2147483647, %v657
        %v684 = vand.u32 2147483647, %v662
        %v685 = vand.u32 2147483647, %v667
        %v686 = vand.u32 2147483647, %v672
        %v687 = vsub.f32 0.0, %v681
        %v688 = vsub.f32 0.0, %v682
        %v689 = vsub.f32 0.0, %v683
        %v690 = vsub.f32 0.0, %v684
        %v691 = vsub.f32 0.0, %v685
        %v692 = vsub.f32 0.0, %v686
        %v693 = vmul.f32 %v687, 1.442695
        %v694 = vpow.pop %v693
        %v695 = vmul.f32 %v688, 1.442695
        %v696 = vpow.pop %v695
        %v697 = vmul.f32 %v689, 1.442695
        %v698 = vpow.pop %v697
        %v699 = vmul.f32 %v690, 1.442695
        %v700 = vpow.pop %v699
        %v701 = vmul.f32 %v691, 1.442695
        %v702 = vpow.pop %v701
        %v703 = vmul.f32 %v692, 1.442695
        %v704 = vpow.pop %v703
        %v705 = vadd.f32 %v694, 1.0
        %v706 = vlog2.pop %v705
        %v707 = vmul.f32 %v706, 0.6931472
        %v708 = vmul.f32 -0.5, %v694
        %v709 = vadd.f32 %v708, 1.0
        %v710 = vmul.f32 %v709, %v694
        %v711 = vand.u32 2147483647, %v694
        %vm712 = vcmp.lt.f32.partialorder %v711, 0.0004427343
        %v713 = vsel %vm712, %v710, %v707
        %v714 = vadd.f32 %v696, 1.0
        %v715 = vlog2.pop %v714
        %v716 = vmul.f32 %v715, 0.6931472
        %v717 = vmul.f32 -0.5, %v696
        %v718 = vadd.f32 %v717, 1.0
        %v719 = vmul.f32 %v718, %v696
        %v720 = vand.u32 2147483647, %v696
        %vm721 = vcmp.lt.f32.partialorder %v720, 0.0004427343
        %v722 = vsel %vm721, %v719, %v716
        %v723 = vadd.f32 %v698, 1.0
        %v724 = vlog2.pop %v723
        %v725 = vmul.f32 %v724, 0.6931472
        %v726 = vmul.f32 -0.5, %v698
        %v727 = vadd.f32 %v726, 1.0
        %v728 = vmul.f32 %v727, %v698
        %v729 = vand.u32 2147483647, %v698
        %vm730 = vcmp.lt.f32.partialorder %v729, 0.0004427343
        %v731 = vsel %vm730, %v728, %v725
        %v732 = vadd.f32 %v700, 1.0
        %v733 = vlog2.pop %v732
        %v734 = vmul.f32 %v733, 0.6931472
        %v735 = vmul.f32 -0.5, %v700
        %v736 = vadd.f32 %v735, 1.0
        %v737 = vmul.f32 %v736, %v700
        %v738 = vand.u32 2147483647, %v700
        %vm739 = vcmp.lt.f32.partialorder %v738, 0.0004427343
        %v740 = vsel %vm739, %v737, %v734
        %v741 = vadd.f32 %v702, 1.0
        %v742 = vlog2.pop %v741
        %v743 = vmul.f32 %v742, 0.6931472
        %v744 = vmul.f32 -0.5, %v702
        %v745 = vadd.f32 %v744, 1.0
        %v746 = vmul.f32 %v745, %v702
        %v747 = vand.u32 2147483647, %v702
        %vm748 = vcmp.lt.f32.partialorder %v747, 0.0004427343
        %v749 = vsel %vm748, %v746, %v743
        %v750 = vadd.f32 %v704, 1.0
        %v751 = vlog2.pop %v750
        %v752 = vmul.f32 %v751, 0.6931472
        %v753 = vmul.f32 -0.5, %v704
        %v754 = vadd.f32 %v753, 1.0
        %v755 = vmul.f32 %v754, %v704
        %v756 = vand.u32 2147483647, %v704
        %vm757 = vcmp.lt.f32.partialorder %v756, 0.0004427343
        %v758 = vsel %vm757, %v755, %v752
        %v759 = vadd.f32 %v675, %v713
        %v760 = vadd.f32 %v676, %v722
        %v761 = vadd.f32 %v677, %v731
        %v762 = vadd.f32 %v678, %v740
        %v763 = vadd.f32 %v679, %v749
        %v764 = vadd.f32 %v680, %v758
        %v765 = vld [vmem:[#allocation8] sm:$0xff]
        %v766 = vld [vmem:[#allocation8 + $0x8] sm:$0xff]
        %v767 = vld [vmem:[#allocation8 + $0x10] sm:$0xff]
        %v768 = vld [vmem:[#allocation8 + $0x18] sm:$0xff]
        %v769 = vld [vmem:[#allocation8 + $0x20] sm:$0xff]
        %v770 = vld [vmem:[#allocation8 + $0x28] sm:$0xff]
        %v771 = vld [vmem:[#allocation8 + $0x30] sm:$0xff]
        %v772 = vld [vmem:[#allocation8 + $0x38] sm:$0xff]
        %v773 = vld [vmem:[#allocation8 + $0x40] sm:$0xff]
        %v774 = vld [vmem:[#allocation8 + $0x48] sm:$0xff]
        %v775 = vld [vmem:[#allocation8 + $0x50] sm:$0xff]
        %v776 = vld [vmem:[#allocation8 + $0x58] sm:$0xff]
        %v777 = vld [vmem:[#allocation8 + $0x60] sm:$0xff]
        %v778 = vld [vmem:[#allocation8 + $0x68] sm:$0xff]
        %v779 = vld [vmem:[#allocation8 + $0x70] sm:$0xff]
        %v780 = vld [vmem:[#allocation8 + $0x78] sm:$0xff]
        %v781 = vld [vmem:[%s6] sm:$0x1]
        %v783 = vlaneseq
        %v784 = vshrl.u32 %v783, 7
        %v785 = vsub.s32 0, %v784
        %v786 = vrot.slane %v781, %v785
        %788 = vmatprep.subr.mxu0 0.0
        %789 = vmatpush1.msra.mxu0 %v765
        %790 = vmatprep.subr.mxu0 0.0
        %791 = vmatpush1.msra.mxu0 %v766
        %792 = vmatprep.subr.mxu0 0.0
        %793 = vmatpush1.msra.mxu0 %v767
        %794 = vmatprep.subr.mxu0 0.0
        %795 = vmatpush1.msra.mxu0 %v768
        %796 = vmatprep.subr.mxu0 0.0
        %797 = vmatpush1.msra.mxu0 %v769
        %798 = vmatprep.subr.mxu0 0.0
        %799 = vmatpush1.msra.mxu0 %v770
        %800 = vmatprep.subr.mxu0 0.0
        %801 = vmatpush1.msra.mxu0 %v771
        %802 = vmatprep.subr.mxu0 0.0
        %803 = vmatpush1.msra.mxu0 %v772
        %804 = vmatprep.subr.mxu0 0.0
        %805 = vmatpush1.msra.mxu0 %v773
        %806 = vmatprep.subr.mxu0 0.0
        %807 = vmatpush1.msra.mxu0 %v774
        %808 = vmatprep.subr.mxu0 0.0
        %809 = vmatpush1.msra.mxu0 %v775
        %810 = vmatprep.subr.mxu0 0.0
        %811 = vmatpush1.msra.mxu0 %v776
        %812 = vmatprep.subr.mxu0 0.0
        %813 = vmatpush1.msra.mxu0 %v777
        %814 = vmatprep.subr.mxu0 0.0
        %815 = vmatpush1.msra.mxu0 %v778
        %816 = vmatprep.subr.mxu0 0.0
        %817 = vmatpush1.msra.mxu0 %v779
        %818 = vmatprep.subr.mxu0 0.0
        %819 = vmatpush1.msra.mxu0 %v780
        %820 = vmatprep.subr.mxu0 0.0
        %821 = vmatpush1.msra.mxu0 0.0
        %822 = vmatprep.subr.mxu0 0.0
        %823 = vmatpush1.msra.mxu0 0.0
        %824 = vmatprep.subr.mxu0 0.0
        %825 = vmatpush1.msra.mxu0 0.0
        %826 = vmatprep.subr.mxu0 0.0
        %827 = vmatpush1.msra.mxu0 0.0
        %828 = vmatprep.subr.mxu0 0.0
        %829 = vmatpush1.msra.mxu0 0.0
        %830 = vmatprep.subr.mxu0 0.0
        %831 = vmatpush1.msra.mxu0 0.0
        %832 = vmatprep.subr.mxu0 0.0
        %833 = vmatpush1.msra.mxu0 0.0
        %834 = vmatprep.subr.mxu0 0.0
        %835 = vmatpush1.msra.mxu0 0.0
        %836 = vmatprep.subr.mxu0 0.0
        %837 = vmatpush1.msra.mxu0 0.0
        %838 = vmatprep.subr.mxu0 0.0
        %839 = vmatpush1.msra.mxu0 0.0
        %840 = vmatprep.subr.mxu0 0.0
        %841 = vmatpush1.msra.mxu0 0.0
        %842 = vmatprep.subr.mxu0 0.0
        %843 = vmatpush1.msra.mxu0 0.0
        %844 = vmatprep.subr.mxu0 0.0
        %845 = vmatpush1.msra.mxu0 0.0
        %846 = vmatprep.subr.mxu0 0.0
        %847 = vmatpush1.msra.mxu0 0.0
        %848 = vmatprep.subr.mxu0 0.0
        %849 = vmatpush1.msra.mxu0 0.0
        %850 = vmatprep.subr.mxu0 0.0
        %851 = vmatpush1.msra.mxu0 0.0
        %852 = vmatprep.mubr.f32.mxu0 0.0
        %853 = vmatmul.mubr.f32.gmra.mrb[0].mxu0 %v759
        %v854 = vpop.f32.mrb[0].mxu0
        %v855 = vadd.f32 %v786, %v854
        %v856 = vpop.f32.mrb[0].mxu0
        %857 = vmatprep.mubr.f32.mxu0 0.0
        %858 = vmatmul.mubr.f32.gmra.mrb[0].mxu0 %v760
        %v859 = vpop.f32.mrb[0].mxu0
        %v860 = vadd.f32 %v786, %v859
        %v861 = vpop.f32.mrb[0].mxu0
        %862 = vmatprep.mubr.f32.mxu0 0.0
        %863 = vmatmul.mubr.f32.gmra.mrb[0].mxu0 %v761
        %v864 = vpop.f32.mrb[0].mxu0
        %v865 = vadd.f32 %v786, %v864
        %v866 = vpop.f32.mrb[0].mxu0
        %867 = vmatprep.mubr.f32.mxu0 0.0
        %868 = vmatmul.mubr.f32.gmra.mrb[0].mxu0 %v762
        %v869 = vpop.f32.mrb[0].mxu0
        %v870 = vadd.f32 %v786, %v869
        %v871 = vpop.f32.mrb[0].mxu0
        %872 = vmatprep.mubr.f32.mxu0 0.0
        %873 = vmatmul.mubr.f32.gmra.mrb[0].mxu0 %v763
        %v874 = vpop.f32.mrb[0].mxu0
        %v875 = vadd.f32 %v786, %v874
        %v876 = vpop.f32.mrb[0].mxu0
        %877 = vmatprep.mubr.f32.mxu0 0.0
        %878 = vmatmul.mubr.f32.gmra.mrb[0].mxu0 %v764
        %v879 = vpop.f32.mrb[0].mxu0
        %v880 = vadd.f32 %v786, %v879
        %v881 = vpop.f32.mrb[0].mxu0
        %882 = vdwg.mxu0
        %v883 = vmax.f32 %v855, 0.0
        %v884 = vmax.f32 %v860, 0.0
        %v885 = vmax.f32 %v865, 0.0
        %v886 = vmax.f32 %v870, 0.0
        %v887 = vmax.f32 %v875, 0.0
        %v888 = vmax.f32 %v880, 0.0
        %v889 = vand.u32 2147483647, %v855
        %v890 = vand.u32 2147483647, %v860
        %v891 = vand.u32 2147483647, %v865
        %v892 = vand.u32 2147483647, %v870
        %v893 = vand.u32 2147483647, %v875
        %v894 = vand.u32 2147483647, %v880
        %v895 = vsub.f32 0.0, %v889
        %v896 = vsub.f32 0.0, %v890
        %v897 = vsub.f32 0.0, %v891
        %v898 = vsub.f32 0.0, %v892
        %v899 = vsub.f32 0.0, %v893
        %v900 = vsub.f32 0.0, %v894
        %v901 = vmul.f32 %v895, 1.442695
        %v902 = vpow.pop %v901
        %v903 = vmul.f32 %v896, 1.442695
        %v904 = vpow.pop %v903
        %v905 = vmul.f32 %v897, 1.442695
        %v906 = vpow.pop %v905
        %v907 = vmul.f32 %v898, 1.442695
        %v908 = vpow.pop %v907
        %v909 = vmul.f32 %v899, 1.442695
        %v910 = vpow.pop %v909
        %v911 = vmul.f32 %v900, 1.442695
        %v912 = vpow.pop %v911
        %v913 = vadd.f32 %v902, 1.0
        %v914 = vlog2.pop %v913
        %v915 = vmul.f32 %v914, 0.6931472
        %v916 = vmul.f32 -0.5, %v902
        %v917 = vadd.f32 %v916, 1.0
        %v918 = vmul.f32 %v917, %v902
        %v919 = vand.u32 2147483647, %v902
        %vm920 = vcmp.lt.f32.partialorder %v919, 0.0004427343
        %v921 = vsel %vm920, %v918, %v915
        %v922 = vadd.f32 %v904, 1.0
        %v923 = vlog2.pop %v922
        %v924 = vmul.f32 %v923, 0.6931472
        %v925 = vmul.f32 -0.5, %v904
        %v926 = vadd.f32 %v925, 1.0
        %v927 = vmul.f32 %v926, %v904
        %v928 = vand.u32 2147483647, %v904
        %vm929 = vcmp.lt.f32.partialorder %v928, 0.0004427343
        %v930 = vsel %vm929, %v927, %v924
        %v931 = vadd.f32 %v906, 1.0
        %v932 = vlog2.pop %v931
        %v933 = vmul.f32 %v932, 0.6931472
        %v934 = vmul.f32 -0.5, %v906
        %v935 = vadd.f32 %v934, 1.0
        %v936 = vmul.f32 %v935, %v906
        %v937 = vand.u32 2147483647, %v906
        %vm938 = vcmp.lt.f32.partialorder %v937, 0.0004427343
        %v939 = vsel %vm938, %v936, %v933
        %v940 = vadd.f32 %v908, 1.0
        %v941 = vlog2.pop %v940
        %v942 = vmul.f32 %v941, 0.6931472
        %v943 = vmul.f32 -0.5, %v908
        %v944 = vadd.f32 %v943, 1.0
        %v945 = vmul.f32 %v944, %v908
        %v946 = vand.u32 2147483647, %v908
        %vm947 = vcmp.lt.f32.partialorder %v946, 0.0004427343
        %v948 = vsel %vm947, %v945, %v942
        %v949 = vadd.f32 %v910, 1.0
        %v950 = vlog2.pop %v949
        %v951 = vmul.f32 %v950, 0.6931472
        %v952 = vmul.f32 -0.5, %v910
        %v953 = vadd.f32 %v952, 1.0
        %v954 = vmul.f32 %v953, %v910
        %v955 = vand.u32 2147483647, %v910
        %vm956 = vcmp.lt.f32.partialorder %v955, 0.0004427343
        %v957 = vsel %vm956, %v954, %v951
        %v958 = vadd.f32 %v912, 1.0
        %v959 = vlog2.pop %v958
        %v960 = vmul.f32 %v959, 0.6931472
        %v961 = vmul.f32 -0.5, %v912
        %v962 = vadd.f32 %v961, 1.0
        %v963 = vmul.f32 %v962, %v912
        %v964 = vand.u32 2147483647, %v912
        %vm965 = vcmp.lt.f32.partialorder %v964, 0.0004427343
        %v966 = vsel %vm965, %v963, %v960
        %v967 = vadd.f32 %v883, %v921
        %v968 = vadd.f32 %v884, %v930
        %v969 = vadd.f32 %v885, %v939
        %v970 = vadd.f32 %v886, %v948
        %v971 = vadd.f32 %v887, %v957
        %v972 = vadd.f32 %v888, %v966
        %973 = vst [vmem:[%s340] sm:$0xff] %v967
        %974 = vst [vmem:[%s340 + $0x8] sm:$0xff] %v968
        %975 = vst [vmem:[%s340 + $0x10] sm:$0xff] %v969
        %976 = vst [vmem:[%s340 + $0x18] sm:$0xff] %v970
        %977 = vst [vmem:[%s340 + $0x20] sm:$0xff] %v971
        %978 = vst [vmem:[%s340 + $0x28] sm:$0xff] %v972
        %s979 = sand.u32 %s186, 1
        %s980 = scalar_lea.sflag [#allocation4], %s979
        %s981 = sand.u32 %s186, 1
        %s982 = smul.addr %s981, 48
        %s983 = scalar_lea.vmem [#allocation10], %s982
        // Predicated region
        $region65: #{tpu_custom_call.1} parent=47 // pred_check
          %p984 = pneg %p196
        $region66: #{tpu_custom_call.1} parent=47 // pred_check_branch
          %986 = sbr.rel (%p984) target = $region68
        $region67: #{tpu_custom_call.1} parent=47 // pred_region
          %s987 = smul.u32 6, %s26
          %s989 = ssub.s32 768, 768
          %990 = vsyncadd %s980, %s989
          %s991 = smul.addr %s987, 128
          %s992 = scalar_lea.hbm %s7, %s991
          %s993 = sshll.u32 %s983, 4
          %s994 = int_to_ptr.vmem [resolvable:$true] %s993
          %999 = dma.vmem_to_hbm [thread:$0]  %s994, 768, %s992, %s980, 128, 128, 8
        $region68: #{tpu_custom_call.1} parent=47 // pred_fallthru
          _
      $region48: #{tpu_custom_call.1} parent=5 // pred_fallthru
        _
      %p1000 = scmp.le.s32.totalorder 2, %s21
      // Predicated region
      $region69: #{tpu_custom_call.1} parent=5 // pred_check
        %p1001 = pneg %p1000
      $region70: #{tpu_custom_call.1} parent=5 // pred_check_branch
        %1003 = sbr.rel (%p1001) target = $region72
      $region71: #{tpu_custom_call.1} parent=5 // pred_region
        %s1004 = ssub.s32 %s21, 2
        // Predicated region
        $region73: #{tpu_custom_call.1} parent=71 // pred_check
          %p1005 = pneg %p202
        $region74: #{tpu_custom_call.1} parent=71 // pred_check_branch
          %1007 = sbr.rel (%p1005) target = $region76
        $region75: #{tpu_custom_call.1} parent=71 // pred_region
          %s1008 = sand.u32 %s187, 1
          %s1009 = scalar_lea.sflag [#allocation4], %s1008
          %s1010 = sand.u32 %s187, 1
          %s1011 = smul.addr %s1010, 48
          %s1012 = scalar_lea.vmem [#allocation10], %s1011
          %1013 = dma.done %s1009, 768
        $region76: #{tpu_custom_call.1} parent=71 // pred_fallthru
          _
      $region72: #{tpu_custom_call.1} parent=5 // pred_fallthru
        _
    $region6: #{tpu_custom_call.1} parent=1 // loop_footer
      %s25 = sadd.s32 1, %s21
    $region7: #{tpu_custom_call.1} parent=1 // loop_footer_branch
      %20 = sbr.rel target = $region3
    $region8: #{tpu_custom_call.1} parent=1 // loop_exit
      _
    %1014 = vsyncpa [#allocation3], 1
    %s1015 = scalar_lea.sflag [#allocation3], 1
    %1016 = vsyncpa %s1015, 1
    %1017 = vsyncpa [#allocation6], 1
    %1018 = vsyncpa [#allocation9], 1
    %1019 = vsyncpa [#allocation4], 1
    %s1020 = scalar_lea.sflag [#allocation4], 1
    %1021 = vsyncpa %s1020, 1

</llo_original>
